<compile_context>
chip_gen: v7x
topology: tpu7x:2x2x1
jax: 0.10.0
libtpu: 0.0.40
codegen_flags: <defaults>
</compile_context>

<pallas_src>
import functools

import jax
import jax.numpy as jnp
from jax.experimental import pallas as pl
from jax.experimental.pallas import tpu as pltpu

LEAKY_SLOPE = 0.2
BN_EPS = 1e-5
KW = 4          # kernel size used by NLayerDiscriminator
PADW = 1

LANES = 128
TM_ABS_MAX = 2048   # absolute M-tile ceiling (VMEM budget may lower it)


def _vmem_capacity_bytes():
    try:
        cap = getattr(pltpu.get_tpu_info(), "vmem_capacity_bytes", None)
        if cap:
            return int(cap)
    except Exception:
        pass
    return 64 * 1024 * 1024   # v7x-safe fallback


_VMEM_CAP = _vmem_capacity_bytes()
VMEM_LIMIT = int(_VMEM_CAP * 0.8)          # scoped limit we request from Mosaic
TILE_BUDGET = int(VMEM_LIMIT * 0.85)       # what the tile-picker may spend

_MM_PARAMS = pltpu.CompilerParams(
    dimension_semantics=("parallel",),
    vmem_limit_bytes=VMEM_LIMIT,
)
_EW_PARAMS = pltpu.CompilerParams(
    dimension_semantics=("parallel",),
    vmem_limit_bytes=VMEM_LIMIT,
)


def _round_up(x, m):
    return ((x + m - 1) // m) * m


# ----------------------------- Pallas kernels ------------------------------ #
def _conv_bias_kernel(x_ref, w_ref, b_ref, o_ref, *, leaky):
    """Full-K conv-as-matmul (+bias) with optional fused LeakyReLU(0.2)."""
    y = jnp.dot(x_ref[...], w_ref[...], preferred_element_type=jnp.float32)
    y = y + b_ref[...]
    if leaky:
        y = jnp.where(y >= 0, y, LEAKY_SLOPE * y)
    o_ref[...] = y.astype(o_ref.dtype)


def _conv_stats_kernel(x_ref, w_ref, y_ref, stats_ref):
    """Full-K conv-as-matmul; also emits this M tile's per-channel sum /
    sum-of-squares (rows 0 and 1 of an (8, Cp) stats tile) in a single pass."""
    acc = jnp.dot(x_ref[...], w_ref[...], preferred_element_type=jnp.float32)
    y_ref[...] = acc.astype(y_ref.dtype)
    ssum = jnp.sum(acc, axis=0, keepdims=True)        # (1, Cp)
    ssq = jnp.sum(acc * acc, axis=0, keepdims=True)   # (1, Cp)
    rows = jax.lax.broadcasted_iota(jnp.int32, stats_ref.shape, 0)
    stats_ref[...] = jnp.where(rows == 0, ssum,
                               jnp.where(rows == 1, ssq, 0.0))


def _scale_shift_leaky_kernel(y_ref, s_ref, t_ref, o_ref):
    """Elementwise y*scale + shift followed by LeakyReLU(0.2)."""
    y = y_ref[...].astype(jnp.float32) * s_ref[...] + t_ref[...]
    o_ref[...] = jnp.where(y >= 0, y, LEAKY_SLOPE * y).astype(o_ref.dtype)


# ------------------------------- JAX glue ---------------------------------- #
def _im2col(x_nhwc, kw, stride, pad):
    """(N,H,W,C) -> (N*OH*OW, kw*kw*C) with patch element order (kh, kw, c)."""
    n, h, w, c = x_nhwc.shape
    xp = jnp.pad(x_nhwc, ((0, 0), (pad, pad), (pad, pad), (0, 0)))
    oh = (h + 2 * pad - kw) // stride + 1
    ow = (w + 2 * pad - kw) // stride + 1
    cols = []
    for i in range(kw):
        for j in range(kw):
            sl = xp[:, i:i + stride * (oh - 1) + 1:stride,
                    j:j + stride * (ow - 1) + 1:stride, :]
            cols.append(sl)
    patches = jnp.concatenate(cols, axis=-1)  # (N, OH, OW, kw*kw*C)
    return patches.reshape(n * oh * ow, kw * kw * c), oh, ow


def _pick_tiles(m, k_pad, cp, out_bytes, budget):
    """Largest 128-multiple tm whose double-buffered full-K footprint fits the
    budget, then shrunk to divide M tightly (minimal M padding)."""
    def fits(tm):
        lhs = 2 * tm * k_pad * 2          # bf16 lhs, double-buffered
        rhs = 2 * k_pad * cp * 2          # bf16 weights (counted x2, conservative)
        out = 2 * tm * cp * out_bytes
        sts = 2 * 8 * cp * 4
        return lhs + rhs + out + sts <= budget

    tm_cap = TM_ABS_MAX
    while tm_cap > LANES and not fits(tm_cap):
        tm_cap -= LANES

    n_m = pl.cdiv(m, tm_cap)
    if m >= 2 * LANES:
        n_m = max(n_m, 2)                 # keep both v7x TensorCores busy
    tm = _round_up(pl.cdiv(m, n_m), LANES)
    return tm, n_m, n_m * tm


def init_params(key, input_nc, ndf=64, n_layers=3):
    """Deterministic parameter init matching NLayerDiscriminator's layer plan
    (norm_layer = nn.BatchNorm2d => use_bias = False for the BN convs)."""
    cfgs = [dict(cin=input_nc, cout=ndf, stride=2, bias=True, bn=False, act="leaky")]
    nf_mult = 1
    for n in range(1, n_layers):
        nf_prev, nf_mult = nf_mult, min(2 ** n, 8)
        cfgs.append(dict(cin=ndf * nf_prev, cout=ndf * nf_mult, stride=2,
                         bias=False, bn=True, act="leaky"))
    nf_prev, nf_mult = nf_mult, min(2 ** n_layers, 8)
    cfgs.append(dict(cin=ndf * nf_prev, cout=ndf * nf_mult, stride=1,
                     bias=False, bn=True, act="leaky"))
    cfgs.append(dict(cin=ndf * nf_mult, cout=1, stride=1,
                     bias=True, bn=False, act=None))

    params = []
    for cfg in cfgs:
        key, kw_, kb_ = jax.random.split(key, 3)
        w = jax.random.normal(kw_, (cfg["cout"], cfg["cin"], KW, KW), jnp.float32) * 0.05
        b = (jax.random.normal(kb_, (cfg["cout"],), jnp.float32) * 0.05
             if cfg["bias"] else None)
        gamma = jnp.ones((cfg["cout"],), jnp.float32) if cfg["bn"] else None
        beta = jnp.zeros((cfg["cout"],), jnp.float32) if cfg["bn"] else None
        params.append(dict(w=w, b=b, gamma=gamma, beta=beta,
                           stride=cfg["stride"], bn=cfg["bn"], act=cfg["act"]))
    return params


def _conv_layer(x_nhwc, lp, out_dtype):
    """One conv (+BN) (+LeakyReLU) layer via a 1-D-grid Pallas matmul with
    VMEM-resident full-K weights.  Input may carry zero-padded channels;
    output keeps its Cout padded to a multiple of 128 (lane-dense carry)."""
    batch = x_nhwc.shape[0]
    c_act = x_nhwc.shape[-1]                 # carried (possibly padded) channels
    w = lp["w"]
    cout, cin = w.shape[0], w.shape[1]

    patches, oh, ow = _im2col(x_nhwc, KW, lp["stride"], PADW)   # bf16, K = 16*c_act
    m, k = patches.shape

    # (Cout,Cin,KH,KW) -> (KH,KW,Cin,Cout); zero-pad Cin rows to match the
    # carried channel padding of the activation; flatten to (K, Cout) matching
    # the (kh, kw, c) patch ordering of _im2col.
    w_t = jnp.transpose(w, (2, 3, 1, 0)).astype(jnp.bfloat16)
    w_t = jnp.pad(w_t, ((0, 0), (0, 0), (0, c_act - cin), (0, 0)))
    wmat = w_t.reshape(KW * KW * c_act, cout)

    cp = _round_up(cout, LANES)              # lane-dense padded Cout
    k_pad = _round_up(k, LANES)
    out_bytes = jnp.dtype(out_dtype).itemsize
    tm, n_m, m_pad = _pick_tiles(m, k_pad, cp, out_bytes, TILE_BUDGET)

    lhs = jnp.pad(patches, ((0, m_pad - m), (0, k_pad - k)))          # bf16
    rhs = jnp.pad(wmat, ((0, k_pad - k), (0, cp - cout)))             # bf16

    cost = pl.CostEstimate(
        flops=2 * m_pad * k_pad * cp,
        transcendentals=0,
        bytes_accessed=int(m_pad * k_pad * 2 + k_pad * cp * 2
                           + m_pad * cp * out_bytes),
    )

    lhs_spec = pl.BlockSpec((tm, k_pad), lambda i: (i, 0))
    rhs_spec = pl.BlockSpec((k_pad, cp), lambda i: (0, 0))   # VMEM-resident weights
    y_spec = pl.BlockSpec((tm, cp), lambda i: (i, 0))

    if lp["bn"]:
        # Pass 1: conv + per-M-tile channel sum / sumsq partials (single pass).
        y_pad, stats = pl.pallas_call(
            _conv_stats_kernel,
            out_shape=(jax.ShapeDtypeStruct((m_pad, cp), jnp.bfloat16),
                       jax.ShapeDtypeStruct((8 * n_m, cp), jnp.float32)),
            grid=(n_m,),
            in_specs=[lhs_spec, rhs_spec],
            out_specs=(y_spec, pl.BlockSpec((8, cp), lambda i: (i, 0))),
            compiler_params=_MM_PARAMS,
            cost_estimate=cost,
        )(lhs, rhs)

        # Fold BN into one per-channel scale/shift (padded rows/channels
        # contribute 0, so dividing by the true M gives exact biased stats;
        # padded channels get gamma=beta=0 -> stay exactly zero downstream).
        st = stats.reshape(n_m, 8, cp)
        ssum = jnp.sum(st[:, 0, :], axis=0)
        ssq = jnp.sum(st[:, 1, :], axis=0)
        mean = ssum / m
        var = jnp.maximum(ssq / m - mean * mean, 0.0)
        gamma = jnp.pad(lp["gamma"], (0, cp - cout))
        beta = jnp.pad(lp["beta"], (0, cp - cout))
        scale = gamma * jax.lax.rsqrt(var + BN_EPS)
        shift = beta - mean * scale

        # Pass 2: tiled elementwise normalize + LeakyReLU (bf16 in / bf16 out).
        out_pad = pl.pallas_call(
            _scale_shift_leaky_kernel,
            out_shape=jax.ShapeDtypeStruct((m_pad, cp), out_dtype),
            grid=(n_m,),
            in_specs=[pl.BlockSpec((tm, cp), lambda i: (i, 0)),
                      pl.BlockSpec((1, cp), lambda i: (0, 0)),
                      pl.BlockSpec((1, cp), lambda i: (0, 0))],
            out_specs=pl.BlockSpec((tm, cp), lambda i: (i, 0)),
            compiler_params=_EW_PARAMS,
        )(y_pad, scale.reshape(1, cp), shift.reshape(1, cp))
    else:
        bias = jnp.pad(lp["b"], (0, cp - cout)).reshape(1, cp)
        out_pad = pl.pallas_call(
            functools.partial(_conv_bias_kernel, leaky=(lp["act"] == "leaky")),
            out_shape=jax.ShapeDtypeStruct((m_pad, cp), out_dtype),
            grid=(n_m,),
            in_specs=[lhs_spec, rhs_spec,
                      pl.BlockSpec((1, cp), lambda i: (0, 0))],
            out_specs=y_spec,
            compiler_params=_MM_PARAMS,
            cost_estimate=cost,
        )(lhs, rhs, bias)

    # Keep the lane-dense padded channels; only trim the padded M rows.
    return out_pad[:m].reshape(batch, oh, ow, cp)


def discriminator_forward(x_nchw, params):
    """Pallas-backed forward.  Input/output are NCHW (PyTorch convention)."""
    x = jnp.transpose(x_nchw, (0, 2, 3, 1)).astype(jnp.bfloat16)   # NHWC bf16
    n_total = len(params)
    for idx, lp in enumerate(params):
        out_dtype = jnp.float32 if idx == n_total - 1 else jnp.bfloat16
        x = _conv_layer(x, lp, out_dtype)
    cout_last = params[-1]["w"].shape[0]
    x = x[..., :cout_last].astype(jnp.float32)                     # drop pad channels
    return jnp.transpose(x, (0, 3, 1, 2))  # -> NCHW


# --------------------------- pure-JAX reference ----------------------------- #
def _ref_forward(x_nchw, params):
    y = x_nchw
    for lp in params:
        y = jax.lax.conv_general_dilated(
            y, lp["w"], (lp["stride"],) * 2, [(PADW, PADW), (PADW, PADW)],
            dimension_numbers=("NCHW", "OIHW", "NCHW"))
        if lp["b"] is not None:
            y = y + lp["b"].reshape(1, -1, 1, 1)
        if lp["bn"]:
            mean = jnp.mean(y, axis=(0, 2, 3), keepdims=True)
            var = jnp.mean((y - mean) ** 2, axis=(0, 2, 3), keepdims=True)
            y = ((y - mean) * jax.lax.rsqrt(var + BN_EPS)
                 * lp["gamma"].reshape(1, -1, 1, 1) + lp["beta"].reshape(1, -1, 1, 1))
        if lp["act"] == "leaky":
            y = jnp.where(y >= 0, y, LEAKY_SLOPE * y)
    return y


# ---------------------------------- main ------------------------------------ #
if __name__ == "__main__":
    key = jax.random.PRNGKey(0)
    k_in, k_par = jax.random.split(key)

    # Small, module-consistent shapes: batch=2, input_nc=3, 32x32, ndf=8, n_layers=3.
    batch, input_nc, hw = 2, 3, 32
    ndf, n_layers = 8, 3

    x = jax.random.normal(k_in, (batch, input_nc, hw, hw), jnp.float32)
    params = init_params(k_par, input_nc, ndf=ndf, n_layers=n_layers)

    out = discriminator_forward(x, params)
    out = jax.block_until_ready(out)

    ref = jax.block_until_ready(_ref_forward(x, params))
    assert out.shape == ref.shape, (out.shape, ref.shape)
    # bf16 activations/weights through 5 layers vs f32 reference -> looser tol.
    assert jnp.allclose(out, ref, rtol=5e-2, atol=5e-2), \
        float(jnp.max(jnp.abs(out - ref)))

    print("KERNEL_OK")
</pallas_src>

<mosaic_0001>
module attributes {stable_mosaic.version = 11 : i64} {
  func.func @_conv_bias_kernel(%arg0: i32, %arg1: memref<256x128xbf16, #tpu.memory_space<vmem>>, %arg2: memref<128x128xbf16, #tpu.memory_space<vmem>>, %arg3: memref<1x128xf32, #tpu.memory_space<vmem>>, %arg4: memref<256x128xbf16, #tpu.memory_space<vmem>>) attributes {dimension_semantics = [#tpu.dimension_semantics<parallel>], iteration_bounds = array<i64: 2>, scalar_prefetch = 0 : i64, scratch_operands = 0 : i64, tpu.core_type = #tpu.core_type<tc>, window_params = [{transform_indices = @transform_0, window_bounds = array<i64: 256, 128>}, {pipeline_mode = #tpu.pipeline_mode<synchronous>, transform_indices = @transform_1, window_bounds = array<i64: 128, 128>}, {pipeline_mode = #tpu.pipeline_mode<synchronous>, transform_indices = @transform_2, window_bounds = array<i64: 1, 128>}, {transform_indices = @transform_3, window_bounds = array<i64: 256, 128>}]} {
    %c0 = arith.constant 0 : index
    %c0_0 = arith.constant 0 : index
    %0 = vector.load %arg1[%c0, %c0_0] : memref<256x128xbf16, #tpu.memory_space<vmem>>, vector<256x128xbf16>
    %c0_1 = arith.constant 0 : index
    %c0_2 = arith.constant 0 : index
    %1 = vector.load %arg2[%c0_1, %c0_2] : memref<128x128xbf16, #tpu.memory_space<vmem>>, vector<128x128xbf16>
    %cst = arith.constant dense<0.000000e+00> : vector<256x128xf32>
    %2 = tpu.matmul %0, %1, %cst {dimension_numbers = #tpu.dot_dimension_numbers<[1], [0], [0], [1], [0, 0, 1, 1], [], []>} : vector<256x128xbf16>, vector<128x128xbf16>, vector<256x128xf32> -> vector<256x128xf32>
    %c0_3 = arith.constant 0 : index
    %c0_4 = arith.constant 0 : index
    %3 = vector.load %arg3[%c0_3, %c0_4] : memref<1x128xf32, #tpu.memory_space<vmem>>, vector<1x128xf32>
    %4 = vector.broadcast %3 : vector<1x128xf32> to vector<256x128xf32>
    %5 = arith.addf %2, %4 : vector<256x128xf32>
    %cst_5 = arith.constant 0.000000e+00 : f32
    %6 = vector.broadcast %cst_5 : f32 to vector<256x128xf32>
    %7 = arith.cmpf oge, %5, %6 : vector<256x128xf32>
    %cst_6 = arith.constant 2.000000e-01 : f32
    %8 = vector.broadcast %cst_6 : f32 to vector<256x128xf32>
    %9 = arith.mulf %8, %5 : vector<256x128xf32>
    %10 = arith.select %7, %5, %9 : vector<256x128xi1>, vector<256x128xf32>
    %11 = arith.truncf %10 : vector<256x128xf32> to vector<256x128xbf16>
    %c0_7 = arith.constant 0 : index
    %c0_8 = arith.constant 0 : index
    %12 = vector.load %arg4[%c0_7, %c0_8] : memref<256x128xbf16, #tpu.memory_space<vmem>>, vector<256x128xbf16>
    tpu.vector_store %arg4[%c0_7, %c0_8], %11 {strides = array<i32>} : memref<256x128xbf16, #tpu.memory_space<vmem>>, vector<256x128xbf16>,
    return
  }
  func.func @transform_0(%arg0: i32) -> (i32, i32) {
    %c0_i32 = arith.constant 0 : i32
    %c0_i32_0 = arith.constant 0 : i32
    return %arg0, %c0_i32 : i32, i32
  }
  func.func @transform_1(%arg0: i32) -> (i32, i32) {
    %c0_i32 = arith.constant 0 : i32
    %c0_i32_0 = arith.constant 0 : i32
    %c0_i32_1 = arith.constant 0 : i32
    return %c0_i32, %c0_i32_0 : i32, i32
  }
  func.func @transform_2(%arg0: i32) -> (i32, i32) {
    %c0_i32 = arith.constant 0 : i32
    %c0_i32_0 = arith.constant 0 : i32
    %c0_i32_1 = arith.constant 0 : i32
    return %c0_i32, %c0_i32_0 : i32, i32
  }
  func.func @transform_3(%arg0: i32) -> (i32, i32) {
    %c0_i32 = arith.constant 0 : i32
    %c0_i32_0 = arith.constant 0 : i32
    return %arg0, %c0_i32 : i32, i32
  }
}

</mosaic_0001>

<llo_original>
// kernel: tpu_custom_call.1
$region0: #{tpu_custom_call.1}
  #allocation0 [shape = 'u32[]', space=smem, size = 0x4, offset = 0x4, fixed_abs, tag = 'smem constant byte address 0x4 - core index']
  #allocation1 [shape = 'u32[144,128]{1,0:T(1,128)}', space=vmem, size = 0x12000, scoped, tag = 'internal scratch']
  %s0 = inlined_call_operand.hbm [shape: bf16[512,128], index: 0, kind: input, shape index: {}]
  %s1 = inlined_call_operand.hbm [shape: bf16[128,128], index: 1, kind: input, shape index: {}]
  %s2 = inlined_call_operand.vmem [shape: f32[1,128], index: 2, kind: input, shape index: {}]
  %s3 = inlined_call_operand.hbm [shape: bf16[512,128], index: 3, kind: output, shape index: {}]
  %s4 = sld [smem:[#allocation0]]
  $region53: #{tpu_custom_call.1} parent=0
    _
  %s6 = ssub.s32 1, %s4
  %s7 = scalar_select 0, %s6, %s4
  $region1: #{tpu_custom_call.1} parent=0
    #allocation2 [shape = 'u8[131072]{0}', space=vmem, size = 0x20000, scoped, tag = 'input window, operand 0']
    #allocation3 [shape = 's32[2]{0}', space=sflag, size = 0x8, scoped, tag = 'scoped memory for tpu_custom_call.1']
    #allocation4 [shape = 's32[2]{0}', space=sflag, size = 0x8, scoped, tag = 'scoped memory for tpu_custom_call.1']
    #allocation5 [shape = 'u8[32768]{0}', space=vmem, size = 0x8000, scoped, tag = 'input window, operand 1, single buffered']
    #allocation6 [shape = 's32[1]{0}', space=sflag, size = 0x4, scoped, tag = 'scoped memory for tpu_custom_call.1']
    #allocation7 [shape = 'u8[131072]{0}', space=vmem, size = 0x20000, scoped, tag = 'output window, operand 0']
    %8 = vsyncpa [#allocation3], 0
    %s9 = scalar_lea.sflag [#allocation3], 1
    %10 = vsyncpa %s9, 0
    %11 = vsyncpa [#allocation6], 0
    %12 = vsyncpa [#allocation4], 0
    %s13 = scalar_lea.sflag [#allocation4], 1
    %14 = vsyncpa %s13, 0
    loop: start=0, step=1, limit=4
    $region2: #{tpu_custom_call.1} parent=1 // loop_pre_header
      _
    $region3: #{tpu_custom_call.1} parent=1 // loop_header
      %s16 = sphi 0, %s20
      %p17 = scmp.ge.s32.totalorder %s16, 4
      %s26 = sphi 0, %s28
      %s29 = sphi 0, %s26
      %s30 = sphi 0, %s29
      %s46 = sphi 0, %s30
      %s50 = sphi 0, %s50
      %s52 = sphi 0, %s50
      %s53 = sphi 0, %s52
      %s67 = sphi 0, %s53
      %s71 = sphi 0, %s71
      %s73 = sphi 0, %s71
      %s74 = sphi 0, %s73
      %s88 = sphi 0, %s74
      %s94 = sphi 0, %s96
      %s97 = sphi 0, %s94
      %s98 = sphi 0, %s97
      %s114 = sphi 0, %s98
    $region4: #{tpu_custom_call.1} parent=1 // loop_header_branch
      %19 = sbr.rel (%p17) target = $region8
    $region5: #{tpu_custom_call.1} parent=1 // loop_body
      %s21 = ssub.s32 %s16, 1
      %s22 = ssub.s32 %s16, 2
      %s23 = sadd.s32 %s16, 1
      %s24 = ssub.s32 %s16, %s23
      %p25 = scmp.eq.s32.totalorder %s24, 0
      %s27 = sadd.s32 %s26, 1
      %s28 = scalar_select %p25, %s26, %s27
      %p31 = pneg %p25
      %p32 = scmp.eq.s32.totalorder %s16, 1
      %p33 = por %p31, %p32
      %p34 = scmp.ne.s32.totalorder %s26, %s29
      %p35 = scmp.eq.s32.totalorder %s16, 0
      %p36 = por %p34, %p35
      %p37 = scmp.ne.s32.totalorder %s26, %s29
      %p38 = scmp.eq.s32.totalorder %s21, 1
      %p39 = por %p37, %p38
      %p40 = scmp.ne.s32.totalorder %s29, %s30
      %p41 = scmp.eq.s32.totalorder %s21, 0
      %p42 = por %p40, %p41
      %p43 = scmp.ne.s32.totalorder %s29, %s30
      %p44 = scmp.eq.s32.totalorder %s22, 1
      %p45 = por %p43, %p44
      %p47 = scmp.ne.s32.totalorder %s30, %s46
      %p48 = scmp.eq.s32.totalorder %s22, 0
      %p49 = por %p47, %p48
      %s51 = sadd.s32 %s50, 1
      %p54 = scmp.eq.s32.totalorder %s16, 1
      %p55 = scmp.ne.s32.totalorder %s50, %s52
      %p56 = scmp.eq.s32.totalorder %s16, 0
      %p57 = por %p55, %p56
      %p58 = scmp.ne.s32.totalorder %s50, %s52
      %p59 = scmp.eq.s32.totalorder %s21, 1
      %p60 = por %p58, %p59
      %p61 = scmp.ne.s32.totalorder %s52, %s53
      %p62 = scmp.eq.s32.totalorder %s21, 0
      %p63 = por %p61, %p62
      %p64 = scmp.ne.s32.totalorder %s52, %s53
      %p65 = scmp.eq.s32.totalorder %s22, 1
      %p66 = por %p64, %p65
      %p68 = scmp.ne.s32.totalorder %s53, %s67
      %p69 = scmp.eq.s32.totalorder %s22, 0
      %p70 = por %p68, %p69
      %s72 = sadd.s32 %s71, 1
      %p75 = scmp.eq.s32.totalorder %s16, 1
      %p76 = scmp.ne.s32.totalorder %s71, %s73
      %p77 = scmp.eq.s32.totalorder %s16, 0
      %p78 = por %p76, %p77
      %p79 = scmp.ne.s32.totalorder %s71, %s73
      %p80 = scmp.eq.s32.totalorder %s21, 1
      %p81 = por %p79, %p80
      %p82 = scmp.ne.s32.totalorder %s73, %s74
      %p83 = scmp.eq.s32.totalorder %s21, 0
      %p84 = por %p82, %p83
      %p85 = scmp.ne.s32.totalorder %s73, %s74
      %p86 = scmp.eq.s32.totalorder %s22, 1
      %p87 = por %p85, %p86
      %p89 = scmp.ne.s32.totalorder %s74, %s88
      %p90 = scmp.eq.s32.totalorder %s22, 0
      %p91 = por %p89, %p90
      %s92 = ssub.s32 %s16, %s23
      %p93 = scmp.eq.s32.totalorder %s92, 0
      %s95 = sadd.s32 %s94, 1
      %s96 = scalar_select %p93, %s94, %s95
      %p99 = pneg %p93
      %p100 = scmp.eq.s32.totalorder %s16, 1
      %p101 = por %p99, %p100
      %p102 = scmp.ne.s32.totalorder %s94, %s97
      %p103 = scmp.eq.s32.totalorder %s16, 0
      %p104 = por %p102, %p103
      %p105 = scmp.ne.s32.totalorder %s94, %s97
      %p106 = scmp.eq.s32.totalorder %s21, 1
      %p107 = por %p105, %p106
      %p108 = scmp.ne.s32.totalorder %s97, %s98
      %p109 = scmp.eq.s32.totalorder %s21, 0
      %p110 = por %p108, %p109
      %p111 = scmp.ne.s32.totalorder %s97, %s98
      %p112 = scmp.eq.s32.totalorder %s22, 1
      %p113 = por %p111, %p112
      %p115 = scmp.ne.s32.totalorder %s98, %s114
      %p116 = scmp.eq.s32.totalorder %s22, 0
      %p117 = por %p115, %p116
      %p118 = scmp.le.s32.totalorder 1, %s16
      %p119 = scmp.lt.s32.totalorder %s16, 3
      %p120 = pnand %p118, %p119
      %p121 = pneg %p120
      // Predicated region
      $region9: #{tpu_custom_call.1} parent=5 // pred_check
        _
      $region10: #{tpu_custom_call.1} parent=5 // pred_check_branch
        %123 = sbr.rel (%p120) target = $region12
      $region11: #{tpu_custom_call.1} parent=5 // pred_region
        %s124 = ssub.s32 %s16, 1
        // Predicated region
        $region13: #{tpu_custom_call.1} parent=11 // pred_check
          %p125 = pneg %p63
        $region14: #{tpu_custom_call.1} parent=11 // pred_check_branch
          %127 = sbr.rel (%p125) target = $region16
        $region15: #{tpu_custom_call.1} parent=11 // pred_region
          %s129 = ssub.s32 1024, 1024
          %130 = vsyncadd [#allocation6], %s129
          %s131 = sshll.u32 [#allocation5], 4
          %s132 = int_to_ptr.vmem [resolvable:$true] %s131
          %137 = dma.hbm_to_vmem [thread:$0]  %s1, 1024, %s132, [#allocation6], 64, 64, 4
        $region16: #{tpu_custom_call.1} parent=11 // pred_fallthru
          _
        // Predicated region
        $region17: #{tpu_custom_call.1} parent=11 // pred_check
          %p138 = pneg %p84
        $region18: #{tpu_custom_call.1} parent=11 // pred_check_branch
          %140 = sbr.rel (%p138) target = $region20
        $region19: #{tpu_custom_call.1} parent=11 // pred_region
          _
        $region20: #{tpu_custom_call.1} parent=11 // pred_fallthru
          _
      $region12: #{tpu_custom_call.1} parent=5 // pred_fallthru
        _
      %p141 = scmp.lt.s32.totalorder %s16, 2
      // Predicated region
      $region21: #{tpu_custom_call.1} parent=5 // pred_check
        %p142 = pneg %p141
      $region22: #{tpu_custom_call.1} parent=5 // pred_check_branch
        %144 = sbr.rel (%p142) target = $region24
      $region23: #{tpu_custom_call.1} parent=5 // pred_region
        // Predicated region
        $region25: #{tpu_custom_call.1} parent=23 // pred_check
          %p145 = pneg %p36
        $region26: #{tpu_custom_call.1} parent=23 // pred_check_branch
          %147 = sbr.rel (%p145) target = $region28
        $region27: #{tpu_custom_call.1} parent=23 // pred_region
          %s148 = sand.u32 %s26, 1
          %s149 = scalar_lea.sflag [#allocation3], %s148
          %s150 = sand.u32 %s26, 1
          %s151 = smul.addr %s150, 128
          %s152 = scalar_lea.vmem [#allocation2], %s151
          %s153 = smul.u32 32, %s16
          %s155 = ssub.s32 2048, 2048
          %156 = vsyncadd %s149, %s155
          %s157 = smul.addr %s153, 64
          %s158 = scalar_lea.hbm %s0, %s157
          %s159 = sshll.u32 %s152, 4
          %s160 = int_to_ptr.vmem [resolvable:$true] %s159
          %165 = dma.hbm_to_vmem [thread:$0]  %s158, 2048, %s160, %s149, 64, 64, 4
        $region28: #{tpu_custom_call.1} parent=23 // pred_fallthru
          _
      $region24: #{tpu_custom_call.1} parent=5 // pred_fallthru
        _
      %p166 = scmp.le.s32.totalorder 1, %s16
      %p167 = scmp.lt.s32.totalorder %s16, 3
      %p168 = pnand %p166, %p167
      %p169 = pneg %p168
      // Predicated region
      $region29: #{tpu_custom_call.1} parent=5 // pred_check
        _
      $region30: #{tpu_custom_call.1} parent=5 // pred_check_branch
        %171 = sbr.rel (%p168) target = $region32
      $region31: #{tpu_custom_call.1} parent=5 // pred_region
        %s172 = ssub.s32 %s16, 1
        %s173 = sand.u32 %s29, 1
        %s174 = scalar_lea.sflag [#allocation3], %s173
        %s175 = sand.u32 %s29, 1
        %s176 = smul.addr %s175, 128
        %s177 = scalar_lea.vmem [#allocation2], %s176
        // Predicated region
        $region33: #{tpu_custom_call.1} parent=31 // pred_check
          %p178 = pneg %p42
        $region34: #{tpu_custom_call.1} parent=31 // pred_check_branch
          %180 = sbr.rel (%p178) target = $region36
        $region35: #{tpu_custom_call.1} parent=31 // pred_region
          %181 = dma.done %s174, 2048
        $region36: #{tpu_custom_call.1} parent=31 // pred_fallthru
          _
        // Predicated region
        $region37: #{tpu_custom_call.1} parent=31 // pred_check
          %p182 = pneg %p63
        $region38: #{tpu_custom_call.1} parent=31 // pred_check_branch
          %184 = sbr.rel (%p182) target = $region40
        $region39: #{tpu_custom_call.1} parent=31 // pred_region
          %185 = dma.done [#allocation6], 1024
        $region40: #{tpu_custom_call.1} parent=31 // pred_fallthru
          _
        %s186 = sand.u32 %s29, 1
        %s187 = scalar_lea.sflag [#allocation3], %s186
        %s188 = sand.u32 %s29, 1
        %s189 = smul.addr %s188, 128
        %s190 = scalar_lea.vmem [#allocation2], %s189
        %p191 = pneg %p42
        %p192 = pneg %p39
        %p193 = pneg %p63
        %p194 = pneg %p60
        %p195 = pneg %p84
        %p196 = pneg %p81
        %p197 = pneg %p110
        %p198 = pneg %p107
        %s199 = sand.u32 %s97, 1
        %s200 = scalar_lea.sflag [#allocation4], %s199
        %s201 = sand.u32 %s97, 1
        %s202 = smul.addr %s201, 128
        %s203 = scalar_lea.vmem [#allocation7], %s202
        %s204 = smul.u32 32, %s21
        %s205 = smul.u32 32, %s21
        %v207 = vld [vmem:[%s177] sm:$0xf]
        %v208 = vld [vmem:[%s177 + $0x4] sm:$0xf]
        %v209 = vld [vmem:[%s177 + $0x8] sm:$0xf]
        %v210 = vld [vmem:[%s177 + $0xc] sm:$0xf]
        %v211 = vld [vmem:[%s177 + $0x10] sm:$0xf]
        %v212 = vld [vmem:[%s177 + $0x14] sm:$0xf]
        %v213 = vld [vmem:[%s177 + $0x18] sm:$0xf]
        %v214 = vld [vmem:[%s177 + $0x1c] sm:$0xf]
        %v215 = vld [vmem:[%s177 + $0x20] sm:$0xf]
        %v216 = vld [vmem:[%s177 + $0x24] sm:$0xf]
        %v217 = vld [vmem:[%s177 + $0x28] sm:$0xf]
        %v218 = vld [vmem:[%s177 + $0x2c] sm:$0xf]
        %v219 = vld [vmem:[%s177 + $0x30] sm:$0xf]
        %v220 = vld [vmem:[%s177 + $0x34] sm:$0xf]
        %v221 = vld [vmem:[%s177 + $0x38] sm:$0xf]
        %v222 = vld [vmem:[%s177 + $0x3c] sm:$0xf]
        %v223 = vld [vmem:[%s177 + $0x40] sm:$0xf]
        %v224 = vld [vmem:[%s177 + $0x44] sm:$0xf]
        %v225 = vld [vmem:[%s177 + $0x48] sm:$0xf]
        %v226 = vld [vmem:[%s177 + $0x4c] sm:$0xf]
        %v227 = vld [vmem:[%s177 + $0x50] sm:$0xf]
        %v228 = vld [vmem:[%s177 + $0x54] sm:$0xf]
        %v229 = vld [vmem:[%s177 + $0x58] sm:$0xf]
        %v230 = vld [vmem:[%s177 + $0x5c] sm:$0xf]
        %v231 = vld [vmem:[%s177 + $0x60] sm:$0xf]
        %v232 = vld [vmem:[%s177 + $0x64] sm:$0xf]
        %v233 = vld [vmem:[%s177 + $0x68] sm:$0xf]
        %v234 = vld [vmem:[%s177 + $0x6c] sm:$0xf]
        %v235 = vld [vmem:[%s177 + $0x70] sm:$0xf]
        %v236 = vld [vmem:[%s177 + $0x74] sm:$0xf]
        %v237 = vld [vmem:[%s177 + $0x78] sm:$0xf]
        %v238 = vld [vmem:[%s177 + $0x7c] sm:$0xf]
        %v239 = vld [vmem:[#allocation5] sm:$0xf]
        %v240 = vld [vmem:[#allocation5 + $0x4] sm:$0xf]
        %v241 = vld [vmem:[#allocation5 + $0x8] sm:$0xf]
        %v242 = vld [vmem:[#allocation5 + $0xc] sm:$0xf]
        %v243 = vld [vmem:[#allocation5 + $0x10] sm:$0xf]
        %v244 = vld [vmem:[#allocation5 + $0x14] sm:$0xf]
        %v245 = vld [vmem:[#allocation5 + $0x18] sm:$0xf]
        %v246 = vld [vmem:[#allocation5 + $0x1c] sm:$0xf]
        %v247 = vld [vmem:[#allocation5 + $0x20] sm:$0xf]
        %v248 = vld [vmem:[#allocation5 + $0x24] sm:$0xf]
        %v249 = vld [vmem:[#allocation5 + $0x28] sm:$0xf]
        %v250 = vld [vmem:[#allocation5 + $0x2c] sm:$0xf]
        %v251 = vld [vmem:[#allocation5 + $0x30] sm:$0xf]
        %v252 = vld [vmem:[#allocation5 + $0x34] sm:$0xf]
        %v253 = vld [vmem:[#allocation5 + $0x38] sm:$0xf]
        %v254 = vld [vmem:[#allocation5 + $0x3c] sm:$0xf]
        %v255 = vld [vmem:[%s2] sm:$0x1]
        %v257 = vlaneseq
        %v258 = vshrl.u32 %v257, 7
        %v259 = vsub.s32 0, %v258
        %v260 = vrot.slane %v255, %v259
        %v294 = vunpack.c.l.b16 %v207
        %v295 = vunpack.c.l.b16 %v208
        %v296 = vunpack.c.l.b16 %v209
        %v297 = vunpack.c.l.b16 %v210
        %v298 = vunpack.c.l.b16 %v211
        %v299 = vunpack.c.l.b16 %v212
        %v300 = vunpack.c.l.b16 %v213
        %v301 = vunpack.c.l.b16 %v214
        %v302 = vunpack.c.l.b16 %v215
        %v303 = vunpack.c.l.b16 %v216
        %v304 = vunpack.c.l.b16 %v217
        %v305 = vunpack.c.l.b16 %v218
        %v306 = vunpack.c.l.b16 %v219
        %v307 = vunpack.c.l.b16 %v220
        %v308 = vunpack.c.l.b16 %v221
        %v309 = vunpack.c.l.b16 %v222
        %v310 = vunpack.c.l.b16 %v223
        %v311 = vunpack.c.l.b16 %v224
        %v312 = vunpack.c.l.b16 %v225
        %v313 = vunpack.c.l.b16 %v226
        %v314 = vunpack.c.l.b16 %v227
        %v315 = vunpack.c.l.b16 %v228
        %v316 = vunpack.c.l.b16 %v229
        %v317 = vunpack.c.l.b16 %v230
        %v318 = vunpack.c.l.b16 %v231
        %v319 = vunpack.c.l.b16 %v232
        %v320 = vunpack.c.l.b16 %v233
        %v321 = vunpack.c.l.b16 %v234
        %v322 = vunpack.c.l.b16 %v235
        %v323 = vunpack.c.l.b16 %v236
        %v324 = vunpack.c.l.b16 %v237
        %v325 = vunpack.c.l.b16 %v238
        %v326 = vpack.c.b16 %v295, %v294
        %v327 = vpack.c.b16 %v297, %v296
        %v328 = vpack.c.b16 %v299, %v298
        %v329 = vpack.c.b16 %v301, %v300
        %v330 = vpack.c.b16 %v303, %v302
        %v331 = vpack.c.b16 %v305, %v304
        %v332 = vpack.c.b16 %v307, %v306
        %v333 = vpack.c.b16 %v309, %v308
        %v334 = vpack.c.b16 %v311, %v310
        %v335 = vpack.c.b16 %v313, %v312
        %v336 = vpack.c.b16 %v315, %v314
        %v337 = vpack.c.b16 %v317, %v316
        %v338 = vpack.c.b16 %v319, %v318
        %v339 = vpack.c.b16 %v321, %v320
        %v340 = vpack.c.b16 %v323, %v322
        %v341 = vpack.c.b16 %v325, %v324
        %v374 = vunpack.c.l.b16 %v239
        %v375 = vunpack.c.l.b16 %v240
        %v376 = vunpack.c.l.b16 %v241
        %v377 = vunpack.c.l.b16 %v242
        %v378 = vunpack.c.l.b16 %v243
        %v379 = vunpack.c.l.b16 %v244
        %v380 = vunpack.c.l.b16 %v245
        %v381 = vunpack.c.l.b16 %v246
        %v382 = vunpack.c.l.b16 %v247
        %v383 = vunpack.c.l.b16 %v248
        %v384 = vunpack.c.l.b16 %v249
        %v385 = vunpack.c.l.b16 %v250
        %v386 = vunpack.c.l.b16 %v251
        %v387 = vunpack.c.l.b16 %v252
        %v388 = vunpack.c.l.b16 %v253
        %v389 = vunpack.c.l.b16 %v254
        %v390 = vpack.c.b16 %v375, %v374
        %v391 = vpack.c.b16 %v377, %v376
        %v392 = vpack.c.b16 %v379, %v378
        %v393 = vpack.c.b16 %v381, %v380
        %v394 = vpack.c.b16 %v383, %v382
        %v395 = vpack.c.b16 %v385, %v384
        %v396 = vpack.c.b16 %v387, %v386
        %v397 = vpack.c.b16 %v389, %v388
        %406 = vmatprep.subr.bf16.mxu0 0
        %407 = vmatpush1.bf16.msra.mxu0 %v390
        %408 = vmatprep.subr.bf16.mxu0 0
        %409 = vmatpush1.bf16.msra.mxu0 %v391
        %410 = vmatprep.subr.bf16.mxu0 0
        %411 = vmatpush1.bf16.msra.mxu0 %v392
        %412 = vmatprep.subr.bf16.mxu0 0
        %413 = vmatpush1.bf16.msra.mxu0 %v393
        %414 = vmatprep.subr.bf16.mxu0 0
        %415 = vmatpush1.bf16.msra.mxu0 %v394
        %416 = vmatprep.subr.bf16.mxu0 0
        %417 = vmatpush1.bf16.msra.mxu0 %v395
        %418 = vmatprep.subr.bf16.mxu0 0
        %419 = vmatpush1.bf16.msra.mxu0 %v396
        %420 = vmatprep.subr.bf16.mxu0 0
        %421 = vmatpush1.bf16.msra.mxu0 %v397
        %422 = vmatprep.subr.bf16.mxu0 0
        %423 = vmatpush1.bf16.msra.mxu0 0
        %424 = vmatprep.subr.bf16.mxu0 0
        %425 = vmatpush1.bf16.msra.mxu0 0
        %426 = vmatprep.subr.bf16.mxu0 0
        %427 = vmatpush1.bf16.msra.mxu0 0
        %428 = vmatprep.subr.bf16.mxu0 0
        %429 = vmatpush1.bf16.msra.mxu0 0
        %430 = vmatprep.subr.bf16.mxu0 0
        %431 = vmatpush1.bf16.msra.mxu0 0
        %432 = vmatprep.subr.bf16.mxu0 0
        %433 = vmatpush1.bf16.msra.mxu0 0
        %434 = vmatprep.subr.bf16.mxu0 0
        %435 = vmatpush1.bf16.msra.mxu0 0
        %436 = vmatprep.subr.bf16.mxu0 0
        %437 = vmatpush1.bf16.msra.mxu0 0
        %438 = vmatprep.mubr.bf16.mxu0 0
        %439 = vmatmul.mubr.bf16.gmra.mrb[0].mxu0 %v326
        %v440 = vpop.f32.mrb[0].mxu0
        %v441 = vadd.f32 %v260, %v440
        %v442 = vpop.f32.mrb[0].mxu0
        %v443 = vpop.f32.mrb[0].mxu0
        %v444 = vadd.f32 %v260, %v443
        %v445 = vpop.f32.mrb[0].mxu0
        %446 = vmatprep.mubr.bf16.mxu0 0
        %447 = vmatmul.mubr.bf16.gmra.mrb[0].mxu0 %v327
        %v448 = vpop.f32.mrb[0].mxu0
        %v449 = vadd.f32 %v260, %v448
        %v450 = vpop.f32.mrb[0].mxu0
        %v451 = vpop.f32.mrb[0].mxu0
        %v452 = vadd.f32 %v260, %v451
        %v453 = vpop.f32.mrb[0].mxu0
        %454 = vmatprep.mubr.bf16.mxu0 0
        %455 = vmatmul.mubr.bf16.gmra.mrb[0].mxu0 %v328
        %v456 = vpop.f32.mrb[0].mxu0
        %v457 = vadd.f32 %v260, %v456
        %v458 = vpop.f32.mrb[0].mxu0
        %v459 = vpop.f32.mrb[0].mxu0
        %v460 = vadd.f32 %v260, %v459
        %v461 = vpop.f32.mrb[0].mxu0
        %462 = vmatprep.mubr.bf16.mxu0 0
        %463 = vmatmul.mubr.bf16.gmra.mrb[0].mxu0 %v329
        %v464 = vpop.f32.mrb[0].mxu0
        %v465 = vadd.f32 %v260, %v464
        %v466 = vpop.f32.mrb[0].mxu0
        %v467 = vpop.f32.mrb[0].mxu0
        %v468 = vadd.f32 %v260, %v467
        %v469 = vpop.f32.mrb[0].mxu0
        %470 = vmatprep.mubr.bf16.mxu0 0
        %471 = vmatmul.mubr.bf16.gmra.mrb[0].mxu0 %v330
        %v472 = vpop.f32.mrb[0].mxu0
        %v473 = vadd.f32 %v260, %v472
        %v474 = vpop.f32.mrb[0].mxu0
        %v475 = vpop.f32.mrb[0].mxu0
        %v476 = vadd.f32 %v260, %v475
        %v477 = vpop.f32.mrb[0].mxu0
        %478 = vmatprep.mubr.bf16.mxu0 0
        %479 = vmatmul.mubr.bf16.gmra.mrb[0].mxu0 %v331
        %v480 = vpop.f32.mrb[0].mxu0
        %v481 = vadd.f32 %v260, %v480
        %v482 = vpop.f32.mrb[0].mxu0
        %v483 = vpop.f32.mrb[0].mxu0
        %v484 = vadd.f32 %v260, %v483
        %v485 = vpop.f32.mrb[0].mxu0
        %486 = vmatprep.mubr.bf16.mxu0 0
        %487 = vmatmul.mubr.bf16.gmra.mrb[0].mxu0 %v332
        %v488 = vpop.f32.mrb[0].mxu0
        %v489 = vadd.f32 %v260, %v488
        %v490 = vpop.f32.mrb[0].mxu0
        %v491 = vpop.f32.mrb[0].mxu0
        %v492 = vadd.f32 %v260, %v491
        %v493 = vpop.f32.mrb[0].mxu0
        %494 = vmatprep.mubr.bf16.mxu0 0
        %495 = vmatmul.mubr.bf16.gmra.mrb[0].mxu0 %v333
        %v496 = vpop.f32.mrb[0].mxu0
        %v497 = vadd.f32 %v260, %v496
        %v498 = vpop.f32.mrb[0].mxu0
        %v499 = vpop.f32.mrb[0].mxu0
        %v500 = vadd.f32 %v260, %v499
        %v501 = vpop.f32.mrb[0].mxu0
        %502 = vmatprep.mubr.bf16.mxu0 0
        %503 = vmatmul.mubr.bf16.gmra.mrb[0].mxu0 %v334
        %v504 = vpop.f32.mrb[0].mxu0
        %v505 = vadd.f32 %v260, %v504
        %v506 = vpop.f32.mrb[0].mxu0
        %v507 = vpop.f32.mrb[0].mxu0
        %v508 = vadd.f32 %v260, %v507
        %v509 = vpop.f32.mrb[0].mxu0
        %510 = vmatprep.mubr.bf16.mxu0 0
        %511 = vmatmul.mubr.bf16.gmra.mrb[0].mxu0 %v335
        %v512 = vpop.f32.mrb[0].mxu0
        %v513 = vadd.f32 %v260, %v512
        %v514 = vpop.f32.mrb[0].mxu0
        %v515 = vpop.f32.mrb[0].mxu0
        %v516 = vadd.f32 %v260, %v515
        %v517 = vpop.f32.mrb[0].mxu0
        %518 = vmatprep.mubr.bf16.mxu0 0
        %519 = vmatmul.mubr.bf16.gmra.mrb[0].mxu0 %v336
        %v520 = vpop.f32.mrb[0].mxu0
        %v521 = vadd.f32 %v260, %v520
        %v522 = vpop.f32.mrb[0].mxu0
        %v523 = vpop.f32.mrb[0].mxu0
        %v524 = vadd.f32 %v260, %v523
        %v525 = vpop.f32.mrb[0].mxu0
        %526 = vmatprep.mubr.bf16.mxu0 0
        %527 = vmatmul.mubr.bf16.gmra.mrb[0].mxu0 %v337
        %v528 = vpop.f32.mrb[0].mxu0
        %v529 = vadd.f32 %v260, %v528
        %v530 = vpop.f32.mrb[0].mxu0
        %v531 = vpop.f32.mrb[0].mxu0
        %v532 = vadd.f32 %v260, %v531
        %v533 = vpop.f32.mrb[0].mxu0
        %534 = vmatprep.mubr.bf16.mxu0 0
        %535 = vmatmul.mubr.bf16.gmra.mrb[0].mxu0 %v338
        %v536 = vpop.f32.mrb[0].mxu0
        %v537 = vadd.f32 %v260, %v536
        %v538 = vpop.f32.mrb[0].mxu0
        %v539 = vpop.f32.mrb[0].mxu0
        %v540 = vadd.f32 %v260, %v539
        %v541 = vpop.f32.mrb[0].mxu0
        %542 = vmatprep.mubr.bf16.mxu0 0
        %543 = vmatmul.mubr.bf16.gmra.mrb[0].mxu0 %v339
        %v544 = vpop.f32.mrb[0].mxu0
        %v545 = vadd.f32 %v260, %v544
        %v546 = vpop.f32.mrb[0].mxu0
        %v547 = vpop.f32.mrb[0].mxu0
        %v548 = vadd.f32 %v260, %v547
        %v549 = vpop.f32.mrb[0].mxu0
        %550 = vmatprep.mubr.bf16.mxu0 0
        %551 = vmatmul.mubr.bf16.gmra.mrb[0].mxu0 %v340
        %v552 = vpop.f32.mrb[0].mxu0
        %v553 = vadd.f32 %v260, %v552
        %v554 = vpop.f32.mrb[0].mxu0
        %v555 = vpop.f32.mrb[0].mxu0
        %v556 = vadd.f32 %v260, %v555
        %v557 = vpop.f32.mrb[0].mxu0
        %558 = vmatprep.mubr.bf16.mxu0 0
        %559 = vmatmul.mubr.bf16.gmra.mrb[0].mxu0 %v341
        %v560 = vpop.f32.mrb[0].mxu0
        %v561 = vadd.f32 %v260, %v560
        %v562 = vpop.f32.mrb[0].mxu0
        %v563 = vpop.f32.mrb[0].mxu0
        %v564 = vadd.f32 %v260, %v563
        %v565 = vpop.f32.mrb[0].mxu0
        %566 = vdwg.mxu0
        %vm567 = vcmp.ge.f32.partialorder %v441, 0.0
        %vm568 = vcmp.ge.f32.partialorder %v444, 0.0
        %vm569 = vcmp.ge.f32.partialorder %v449, 0.0
        %vm570 = vcmp.ge.f32.partialorder %v452, 0.0
        %vm571 = vcmp.ge.f32.partialorder %v457, 0.0
        %vm572 = vcmp.ge.f32.partialorder %v460, 0.0
        %vm573 = vcmp.ge.f32.partialorder %v465, 0.0
        %vm574 = vcmp.ge.f32.partialorder %v468, 0.0
        %vm575 = vcmp.ge.f32.partialorder %v473, 0.0
        %vm576 = vcmp.ge.f32.partialorder %v476, 0.0
        %vm577 = vcmp.ge.f32.partialorder %v481, 0.0
        %vm578 = vcmp.ge.f32.partialorder %v484, 0.0
        %vm579 = vcmp.ge.f32.partialorder %v489, 0.0
        %vm580 = vcmp.ge.f32.partialorder %v492, 0.0
        %vm581 = vcmp.ge.f32.partialorder %v497, 0.0
        %vm582 = vcmp.ge.f32.partialorder %v500, 0.0
        %vm583 = vcmp.ge.f32.partialorder %v505, 0.0
        %vm584 = vcmp.ge.f32.partialorder %v508, 0.0
        %vm585 = vcmp.ge.f32.partialorder %v513, 0.0
        %vm586 = vcmp.ge.f32.partialorder %v516, 0.0
        %vm587 = vcmp.ge.f32.partialorder %v521, 0.0
        %vm588 = vcmp.ge.f32.partialorder %v524, 0.0
        %vm589 = vcmp.ge.f32.partialorder %v529, 0.0
        %vm590 = vcmp.ge.f32.partialorder %v532, 0.0
        %vm591 = vcmp.ge.f32.partialorder %v537, 0.0
        %vm592 = vcmp.ge.f32.partialorder %v540, 0.0
        %vm593 = vcmp.ge.f32.partialorder %v545, 0.0
        %vm594 = vcmp.ge.f32.partialorder %v548, 0.0
        %vm595 = vcmp.ge.f32.partialorder %v553, 0.0
        %vm596 = vcmp.ge.f32.partialorder %v556, 0.0
        %vm597 = vcmp.ge.f32.partialorder %v561, 0.0
        %vm598 = vcmp.ge.f32.partialorder %v564, 0.0
        %v599 = vmul.f32 %v441, 0.2
        %v600 = vmul.f32 %v444, 0.2
        %v601 = vmul.f32 %v449, 0.2
        %v602 = vmul.f32 %v452, 0.2
        %v603 = vmul.f32 %v457, 0.2
        %v604 = vmul.f32 %v460, 0.2
        %v605 = vmul.f32 %v465, 0.2
        %v606 = vmul.f32 %v468, 0.2
        %v607 = vmul.f32 %v473, 0.2
        %v608 = vmul.f32 %v476, 0.2
        %v609 = vmul.f32 %v481, 0.2
        %v610 = vmul.f32 %v484, 0.2
        %v611 = vmul.f32 %v489, 0.2
        %v612 = vmul.f32 %v492, 0.2
        %v613 = vmul.f32 %v497, 0.2
        %v614 = vmul.f32 %v500, 0.2
        %v615 = vmul.f32 %v505, 0.2
        %v616 = vmul.f32 %v508, 0.2
        %v617 = vmul.f32 %v513, 0.2
        %v618 = vmul.f32 %v516, 0.2
        %v619 = vmul.f32 %v521, 0.2
        %v620 = vmul.f32 %v524, 0.2
        %v621 = vmul.f32 %v529, 0.2
        %v622 = vmul.f32 %v532, 0.2
        %v623 = vmul.f32 %v537, 0.2
        %v624 = vmul.f32 %v540, 0.2
        %v625 = vmul.f32 %v545, 0.2
        %v626 = vmul.f32 %v548, 0.2
        %v627 = vmul.f32 %v553, 0.2
        %v628 = vmul.f32 %v556, 0.2
        %v629 = vmul.f32 %v561, 0.2
        %v630 = vmul.f32 %v564, 0.2
        %v631 = vsel %vm567, %v441, %v599
        %v632 = vsel %vm568, %v444, %v600
        %v633 = vsel %vm569, %v449, %v601
        %v634 = vsel %vm570, %v452, %v602
        %v635 = vsel %vm571, %v457, %v603
        %v636 = vsel %vm572, %v460, %v604
        %v637 = vsel %vm573, %v465, %v605
        %v638 = vsel %vm574, %v468, %v606
        %v639 = vsel %vm575, %v473, %v607
        %v640 = vsel %vm576, %v476, %v608
        %v641 = vsel %vm577, %v481, %v609
        %v642 = vsel %vm578, %v484, %v610
        %v643 = vsel %vm579, %v489, %v611
        %v644 = vsel %vm580, %v492, %v612
        %v645 = vsel %vm581, %v497, %v613
        %v646 = vsel %vm582, %v500, %v614
        %v647 = vsel %vm583, %v505, %v615
        %v648 = vsel %vm584, %v508, %v616
        %v649 = vsel %vm585, %v513, %v617
        %v650 = vsel %vm586, %v516, %v618
        %v651 = vsel %vm587, %v521, %v619
        %v652 = vsel %vm588, %v524, %v620
        %v653 = vsel %vm589, %v529, %v621
        %v654 = vsel %vm590, %v532, %v622
        %v655 = vsel %vm591, %v537, %v623
        %v656 = vsel %vm592, %v540, %v624
        %v657 = vsel %vm593, %v545, %v625
        %v658 = vsel %vm594, %v548, %v626
        %v659 = vsel %vm595, %v553, %v627
        %v660 = vsel %vm596, %v556, %v628
        %v661 = vsel %vm597, %v561, %v629
        %v662 = vsel %vm598, %v564, %v630
        %v663 = vpack.c.bf16 %v632, %v631
        %v664 = vpack.c.bf16 %v634, %v633
        %v665 = vpack.c.bf16 %v636, %v635
        %v666 = vpack.c.bf16 %v638, %v637
        %v667 = vpack.c.bf16 %v640, %v639
        %v668 = vpack.c.bf16 %v642, %v641
        %v669 = vpack.c.bf16 %v644, %v643
        %v670 = vpack.c.bf16 %v646, %v645
        %v671 = vpack.c.bf16 %v648, %v647
        %v672 = vpack.c.bf16 %v650, %v649
        %v673 = vpack.c.bf16 %v652, %v651
        %v674 = vpack.c.bf16 %v654, %v653
        %v675 = vpack.c.bf16 %v656, %v655
        %v676 = vpack.c.bf16 %v658, %v657
        %v677 = vpack.c.bf16 %v660, %v659
        %v678 = vpack.c.bf16 %v662, %v661
        %v695 = vunpack.c.l.b16 %v663
        %v696 = vunpack.c.h.b16 %v663
        %v697 = vunpack.c.l.b16 %v664
        %v698 = vunpack.c.h.b16 %v664
        %v699 = vunpack.c.l.b16 %v665
        %v700 = vunpack.c.h.b16 %v665
        %v701 = vunpack.c.l.b16 %v666
        %v702 = vunpack.c.h.b16 %v666
        %v703 = vunpack.c.l.b16 %v667
        %v704 = vunpack.c.h.b16 %v667
        %v705 = vunpack.c.l.b16 %v668
        %v706 = vunpack.c.h.b16 %v668
        %v707 = vunpack.c.l.b16 %v669
        %v708 = vunpack.c.h.b16 %v669
        %v709 = vunpack.c.l.b16 %v670
        %v710 = vunpack.c.h.b16 %v670
        %v711 = vunpack.c.l.b16 %v671
        %v712 = vunpack.c.h.b16 %v671
        %v713 = vunpack.c.l.b16 %v672
        %v714 = vunpack.c.h.b16 %v672
        %v715 = vunpack.c.l.b16 %v673
        %v716 = vunpack.c.h.b16 %v673
        %v717 = vunpack.c.l.b16 %v674
        %v718 = vunpack.c.h.b16 %v674
        %v719 = vunpack.c.l.b16 %v675
        %v720 = vunpack.c.h.b16 %v675
        %v721 = vunpack.c.l.b16 %v676
        %v722 = vunpack.c.h.b16 %v676
        %v723 = vunpack.c.l.b16 %v677
        %v724 = vunpack.c.h.b16 %v677
        %v725 = vunpack.c.l.b16 %v678
        %v726 = vunpack.c.h.b16 %v678
        %v727 = vpack.c.b16 %v695, %v695
        %v728 = vpack.c.b16 %v696, %v696
        %v729 = vpack.c.b16 %v697, %v697
        %v730 = vpack.c.b16 %v698, %v698
        %v731 = vpack.c.b16 %v699, %v699
        %v732 = vpack.c.b16 %v700, %v700
        %v733 = vpack.c.b16 %v701, %v701
        %v734 = vpack.c.b16 %v702, %v702
        %v735 = vpack.c.b16 %v703, %v703
        %v736 = vpack.c.b16 %v704, %v704
        %v737 = vpack.c.b16 %v705, %v705
        %v738 = vpack.c.b16 %v706, %v706
        %v739 = vpack.c.b16 %v707, %v707
        %v740 = vpack.c.b16 %v708, %v708
        %v741 = vpack.c.b16 %v709, %v709
        %v742 = vpack.c.b16 %v710, %v710
        %v743 = vpack.c.b16 %v711, %v711
        %v744 = vpack.c.b16 %v712, %v712
        %v745 = vpack.c.b16 %v713, %v713
        %v746 = vpack.c.b16 %v714, %v714
        %v747 = vpack.c.b16 %v715, %v715
        %v748 = vpack.c.b16 %v716, %v716
        %v749 = vpack.c.b16 %v717, %v717
        %v750 = vpack.c.b16 %v718, %v718
        %v751 = vpack.c.b16 %v719, %v719
        %v752 = vpack.c.b16 %v720, %v720
        %v753 = vpack.c.b16 %v721, %v721
        %v754 = vpack.c.b16 %v722, %v722
        %v755 = vpack.c.b16 %v723, %v723
        %v756 = vpack.c.b16 %v724, %v724
        %v757 = vpack.c.b16 %v725, %v725
        %v758 = vpack.c.b16 %v726, %v726
        %791 = vst [vmem:[%s203] sm:$0xf] %v727
        %792 = vst [vmem:[%s203 + $0x4] sm:$0xf] %v728
        %793 = vst [vmem:[%s203 + $0x8] sm:$0xf] %v729
        %794 = vst [vmem:[%s203 + $0xc] sm:$0xf] %v730
        %795 = vst [vmem:[%s203 + $0x10] sm:$0xf] %v731
        %796 = vst [vmem:[%s203 + $0x14] sm:$0xf] %v732
        %797 = vst [vmem:[%s203 + $0x18] sm:$0xf] %v733
        %798 = vst [vmem:[%s203 + $0x1c] sm:$0xf] %v734
        %799 = vst [vmem:[%s203 + $0x20] sm:$0xf] %v735
        %800 = vst [vmem:[%s203 + $0x24] sm:$0xf] %v736
        %801 = vst [vmem:[%s203 + $0x28] sm:$0xf] %v737
        %802 = vst [vmem:[%s203 + $0x2c] sm:$0xf] %v738
        %803 = vst [vmem:[%s203 + $0x30] sm:$0xf] %v739
        %804 = vst [vmem:[%s203 + $0x34] sm:$0xf] %v740
        %805 = vst [vmem:[%s203 + $0x38] sm:$0xf] %v741
        %806 = vst [vmem:[%s203 + $0x3c] sm:$0xf] %v742
        %807 = vst [vmem:[%s203 + $0x40] sm:$0xf] %v743
        %808 = vst [vmem:[%s203 + $0x44] sm:$0xf] %v744
        %809 = vst [vmem:[%s203 + $0x48] sm:$0xf] %v745
        %810 = vst [vmem:[%s203 + $0x4c] sm:$0xf] %v746
        %811 = vst [vmem:[%s203 + $0x50] sm:$0xf] %v747
        %812 = vst [vmem:[%s203 + $0x54] sm:$0xf] %v748
        %813 = vst [vmem:[%s203 + $0x58] sm:$0xf] %v749
        %814 = vst [vmem:[%s203 + $0x5c] sm:$0xf] %v750
        %815 = vst [vmem:[%s203 + $0x60] sm:$0xf] %v751
        %816 = vst [vmem:[%s203 + $0x64] sm:$0xf] %v752
        %817 = vst [vmem:[%s203 + $0x68] sm:$0xf] %v753
        %818 = vst [vmem:[%s203 + $0x6c] sm:$0xf] %v754
        %819 = vst [vmem:[%s203 + $0x70] sm:$0xf] %v755
        %820 = vst [vmem:[%s203 + $0x74] sm:$0xf] %v756
        %821 = vst [vmem:[%s203 + $0x78] sm:$0xf] %v757
        %822 = vst [vmem:[%s203 + $0x7c] sm:$0xf] %v758
        %s823 = sand.u32 %s97, 1
        %s824 = scalar_lea.sflag [#allocation4], %s823
        %s825 = sand.u32 %s97, 1
        %s826 = smul.addr %s825, 128
        %s827 = scalar_lea.vmem [#allocation7], %s826
        // Predicated region
        $region41: #{tpu_custom_call.1} parent=31 // pred_check
          %p828 = pneg %p107
        $region42: #{tpu_custom_call.1} parent=31 // pred_check_branch
          %830 = sbr.rel (%p828) target = $region44
        $region43: #{tpu_custom_call.1} parent=31 // pred_region
          %s831 = smul.u32 32, %s21
          %s833 = ssub.s32 2048, 2048
          %834 = vsyncadd %s824, %s833
          %s835 = smul.addr %s831, 64
          %s836 = scalar_lea.hbm %s3, %s835
          %s837 = sshll.u32 %s827, 4
          %s838 = int_to_ptr.vmem [resolvable:$true] %s837
          %843 = dma.vmem_to_hbm [thread:$0]  %s838, 2048, %s836, %s824, 64, 64, 4
        $region44: #{tpu_custom_call.1} parent=31 // pred_fallthru
          _
      $region32: #{tpu_custom_call.1} parent=5 // pred_fallthru
        _
      %p844 = scmp.le.s32.totalorder 2, %s16
      // Predicated region
      $region45: #{tpu_custom_call.1} parent=5 // pred_check
        %p845 = pneg %p844
      $region46: #{tpu_custom_call.1} parent=5 // pred_check_branch
        %847 = sbr.rel (%p845) target = $region48
      $region47: #{tpu_custom_call.1} parent=5 // pred_region
        %s848 = ssub.s32 %s16, 2
        // Predicated region
        $region49: #{tpu_custom_call.1} parent=47 // pred_check
          %p849 = pneg %p113
        $region50: #{tpu_custom_call.1} parent=47 // pred_check_branch
          %851 = sbr.rel (%p849) target = $region52
        $region51: #{tpu_custom_call.1} parent=47 // pred_region
          %s852 = sand.u32 %s98, 1
          %s853 = scalar_lea.sflag [#allocation4], %s852
          %s854 = sand.u32 %s98, 1
          %s855 = smul.addr %s854, 128
          %s856 = scalar_lea.vmem [#allocation7], %s855
          %857 = dma.done %s853, 2048
        $region52: #{tpu_custom_call.1} parent=47 // pred_fallthru
          _
      $region48: #{tpu_custom_call.1} parent=5 // pred_fallthru
        _
    $region6: #{tpu_custom_call.1} parent=1 // loop_footer
      %s20 = sadd.s32 1, %s16
    $region7: #{tpu_custom_call.1} parent=1 // loop_footer_branch
      %15 = sbr.rel target = $region3
    $region8: #{tpu_custom_call.1} parent=1 // loop_exit
      _
    %858 = vsyncpa [#allocation3], 1
    %s859 = scalar_lea.sflag [#allocation3], 1
    %860 = vsyncpa %s859, 1
    %861 = vsyncpa [#allocation6], 1
    %862 = vsyncpa [#allocation4], 1
    %s863 = scalar_lea.sflag [#allocation4], 1
    %864 = vsyncpa %s863, 1

</llo_original>
